<compile_context>
chip_gen: v7x
topology: tpu7x:2x2x1
jax: 0.10.0
libtpu: 0.0.40
codegen_flags: <defaults>
</compile_context>

<pallas_src>
import functools

import jax
import jax.numpy as jnp
from jax import lax
from jax.experimental import pallas as pl
from jax.experimental.pallas import tpu as pltpu


def _round_up(x, m):
    return ((x + m - 1) // m) * m


def _vmem_capacity_bytes():
    try:
        info = pltpu.get_tpu_info()
        cap = getattr(info, "vmem_capacity_bytes", None)
        if cap:
            return int(cap)
    except Exception:
        pass
    return 64 << 20            # conservative default: v7x per-TensorCore VMEM


def _center_loss_kernel(meta_ref, f1_ref, f2_ref, f3_ref, out_ref,
                        s12_ref, s32_ref, *,
                        tile_rows, chunk_rows, d_orig, fold_k, mask_tail):
    i = pl.program_id(0)

    @pl.when(i == 0)
    def _init():
        s12_ref[...] = jnp.zeros_like(s12_ref)
        s32_ref[...] = jnp.zeros_like(s32_ref)

    n_valid = meta_ref[0]      # valid rows of the (possibly lane-folded) layout

    def body(r, carry):
        base = pl.multiple_of(r * chunk_rows, chunk_rows)
        rows = pl.ds(base, chunk_rows)
        c1 = f1_ref[rows, :].astype(jnp.float32)
        c2 = f2_ref[rows, :].astype(jnp.float32)
        c3 = f3_ref[rows, :].astype(jnp.float32)
        d12 = c1 - c2
        d32 = c3 - c2
        if mask_tail:          # static: only traced when the grid is ragged
            ridx = (i * tile_rows + base
                    + lax.broadcasted_iota(jnp.int32, (chunk_rows, 1), 0))
            keep = ridx < n_valid
            d12 = jnp.where(keep, d12, 0.0)
            d32 = jnp.where(keep, d32, 0.0)
        # pure vld + vsub + vadd on the hot path; no cross-sublane reduce here.
        s12_ref[...] += d12
        s32_ref[...] += d32
        return carry

    lax.fori_loop(0, tile_rows // chunk_rows, body, 0)

    @pl.when(i == pl.num_programs(0) - 1)
    def _finalize():
        n_f = meta_ref[1].astype(jnp.float32)
        scale = 1.0 / (n_f * n_f)                     # sum((S/N)^2) == sum(S^2)/N^2
        s12 = s12_ref[...]
        s32 = s32_ref[...]
        if fold_k > 1:                                # undo the small-D lane folding
            t12 = s12[:, 0:d_orig]
            t32 = s32[:, 0:d_orig]
            for g in range(1, fold_k):
                lo = g * d_orig
                t12 = t12 + s12[:, lo:lo + d_orig]
                t32 = t32 + s32[:, lo:lo + d_orig]
        else:
            t12, t32 = s12, s32
        c12 = jnp.sum(t12, axis=0, keepdims=True)     # one-time cross-sublane reduce
        c32 = jnp.sum(t32, axis=0, keepdims=True)
        d1 = jnp.sum(c12 * c12) * scale
        d2 = jnp.sum(c32 * c32) * scale
        # max(0, .) kept for fidelity with the PyTorch forward (no-op for l2).
        out_ref[0, 0] = jnp.maximum(d1, 0.0) + jnp.maximum(d2, 0.0)


def center_loss_ref(feat1, feat2, feat3):
    c1 = jnp.mean(feat1.astype(jnp.float32), axis=0)
    c2 = jnp.mean(feat2.astype(jnp.float32), axis=0)
    c3 = jnp.mean(feat3.astype(jnp.float32), axis=0)
    d1 = jnp.maximum(jnp.sum((c1 - c2) ** 2), 0.0)
    d2 = jnp.maximum(jnp.sum((c3 - c2) ** 2), 0.0)
    return d1 + d2


def center_loss_pallas(feat1, feat2, feat3, *, tile_n=None, min_pallas_bytes=256 * 1024):
    """feat1/feat2/feat3: (N, D) arrays of the same shape.  Returns scalar f32 loss."""
    # TODO(synk): dist_type='cos' / 'l1' variants not implemented (module default 'l2');
    # self.margin is unused by the module's forward.
    assert feat1.shape == feat2.shape == feat3.shape, "all feats must share (N, D)"
    assert feat1.ndim == 2
    N, D = feat1.shape
    itemsize = jnp.dtype(feat1.dtype).itemsize
    sub = {4: 8, 2: 16, 1: 32}.get(itemsize, 8)       # native sublane multiple

    # --- tiny-problem fallback -------------------------------------------------
    # A standalone pallas_call is pure launch / DMA-descriptor overhead for the
    # module-sized 8x32 case; XLA fusion of the reference expression is faster.
    if 3 * N * D * itemsize < min_pallas_bytes:
        return center_loss_ref(feat1, feat2, feat3)

    # --- small-D lane folding ----------------------------------------------------
    # (N, D) -> (N/k, k*D) is a free contiguous reshape and restores lane density
    # (D=32 would otherwise waste 3/4 of every vreg and DMA tile).
    fold_k = 1
    if D < 128 and 128 % D == 0:
        fold_k = 128 // D
        while fold_k > 1 and N % fold_k != 0:
            fold_k //= 2
    # TODO(synk): small D that does not divide 128 (e.g. 48) is left unfolded.
    N_eff, D_eff = N // fold_k, fold_k * D
    if N_eff < sub:
        return center_loss_ref(feat1, feat2, feat3)
    if fold_k > 1:
        feat1 = feat1.reshape(N_eff, D_eff)
        feat2 = feat2.reshape(N_eff, D_eff)
        feat3 = feat3.reshape(N_eff, D_eff)

    # --- tile / chunk sizing -----------------------------------------------------
    row_bytes = 3 * D_eff * itemsize                  # bytes per batch row across 3 inputs
    target_step_bytes = 16 << 20                      # ~16 MiB of input per grid step
    vmem_cap = _vmem_capacity_bytes()
    budget_in = min(int(vmem_cap * 0.6), 64 << 20)    # double-buffered input windows

    tn = tile_n if tile_n is not None else max(sub, target_step_bytes // row_bytes)
    tn_cap = max(sub, (budget_in // (2 * row_bytes)) // sub * sub)
    tn = min(tn, tn_cap, _round_up(N_eff, sub))
    tn = max(sub, (tn // sub) * sub)

    # inner-loop row chunk: ~64 KiB of f32 per input keeps vreg live-ranges small
    chunk = (64 * 1024) // max(4 * D_eff, 1)
    chunk = max(sub, min(256, (chunk // sub) * sub))
    chunk = min(chunk, tn)
    tn = max(chunk, (tn // chunk) * chunk)

    grid = (pl.cdiv(N_eff, tn),)
    mask_tail = (N_eff % tn) != 0

    acc_bytes = 2 * chunk * _round_up(D_eff, 128) * 4
    step_bytes = 2 * 3 * tn * D_eff * itemsize        # 3 inputs, double buffered
    vmem_limit = step_bytes + acc_bytes + (2 << 20)
    vmem_limit = int(min(max(vmem_limit, 16 << 20), max(vmem_cap - (4 << 20), 16 << 20)))

    meta = jnp.array([N_eff, N], dtype=jnp.int32)     # [valid folded rows, original N]
    kernel = functools.partial(
        _center_loss_kernel, tile_rows=tn, chunk_rows=chunk,
        d_orig=D, fold_k=fold_k, mask_tail=mask_tail)

    # TODO(synk): on v7x (2 TensorCores) a leading 'parallel' grid axis over D-blocks
    # with per-block partial outputs would roughly double streaming bandwidth for
    # large D; not implemented here (no benefit on single-TC v5e/v6e).
    out = pl.pallas_call(
        kernel,
        out_shape=jax.ShapeDtypeStruct((1, 1), jnp.float32),
        grid_spec=pltpu.PrefetchScalarGridSpec(
            num_scalar_prefetch=1,
            grid=grid,
            in_specs=[
                pl.BlockSpec((tn, D_eff), lambda i, meta: (i, 0)),
                pl.BlockSpec((tn, D_eff), lambda i, meta: (i, 0)),
                pl.BlockSpec((tn, D_eff), lambda i, meta: (i, 0)),
            ],
            out_specs=pl.BlockSpec(
                (1, 1), lambda i, meta: (0, 0),
                memory_space=pltpu.MemorySpace.SMEM),
            scratch_shapes=[
                pltpu.VMEM((chunk, D_eff), jnp.float32),   # running col-sums of f1 - f2
                pltpu.VMEM((chunk, D_eff), jnp.float32),   # running col-sums of f3 - f2
            ],
        ),
        compiler_params=pltpu.CompilerParams(
            dimension_semantics=("arbitrary",),   # batch axis carries the accumulator
            vmem_limit_bytes=vmem_limit,
        ),
    )(meta, feat1, feat2, feat3)
    return out[0, 0]


if __name__ == "__main__":
    keys = jax.random.split(jax.random.PRNGKey(0), 9)

    # Case 1: module-sized toy problem (batch=8, feature_dim=32).  Below the
    # Pallas threshold -> exercises the fused pure-JAX fallback path.
    f1 = jax.random.normal(keys[0], (8, 32), dtype=jnp.float32)
    f2 = jax.random.normal(keys[1], (8, 32), dtype=jnp.float32)
    f3 = jax.random.normal(keys[2], (8, 32), dtype=jnp.float32)
    out1 = jax.block_until_ready(center_loss_pallas(f1, f2, f3))
    ref1 = center_loss_ref(f1, f2, f3)
    assert jnp.allclose(out1, ref1, rtol=1e-5, atol=1e-5), (out1, ref1)

    # Case 2: small-D lane folding (D=32 -> 4 rows folded into 128 lanes), forced
    # through the Pallas path; multi-step accumulator + ragged last tile mask.
    g1 = jax.random.normal(keys[3], (96, 32), dtype=jnp.float32)
    g2 = jax.random.normal(keys[4], (96, 32), dtype=jnp.float32)
    g3 = jax.random.normal(keys[5], (96, 32), dtype=jnp.float32)
    out2 = jax.block_until_ready(
        center_loss_pallas(g1, g2, g3, tile_n=16, min_pallas_bytes=0))
    ref2 = center_loss_ref(g1, g2, g3)
    assert jnp.allclose(out2, ref2, rtol=1e-5, atol=1e-5), (out2, ref2)

    # Case 3: unfolded D=256 with a non-aligned batch (ragged tail handled
    # in-kernel -- no jnp.pad copies), default byte-based tile sizing.
    h1 = jax.random.normal(keys[6], (100, 256), dtype=jnp.float32)
    h2 = jax.random.normal(keys[7], (100, 256), dtype=jnp.float32)
    h3 = jax.random.normal(keys[8], (100, 256), dtype=jnp.float32)
    out3 = jax.block_until_ready(center_loss_pallas(h1, h2, h3))
    ref3 = center_loss_ref(h1, h2, h3)
    assert jnp.allclose(out3, ref3, rtol=1e-5, atol=1e-5), (out3, ref3)

    print("KERNEL_OK")
</pallas_src>

<mosaic_0001>
module attributes {stable_mosaic.version = 11 : i64} {
  func.func @_center_loss_kernel(%arg0: i32, %arg1: memref<2xi32, #tpu.memory_space<smem>>, %arg2: memref<16x128xf32, #tpu.memory_space<vmem>>, %arg3: memref<16x128xf32, #tpu.memory_space<vmem>>, %arg4: memref<16x128xf32, #tpu.memory_space<vmem>>, %arg5: memref<1x1xf32, #tpu.memory_space<smem>>, %arg6: memref<16x128xf32, #tpu.memory_space<vmem>>, %arg7: memref<16x128xf32, #tpu.memory_space<vmem>>) attributes {dimension_semantics = [#tpu.dimension_semantics<arbitrary>], iteration_bounds = array<i64: 2>, scalar_prefetch = 1 : i64, scratch_operands = 2 : i64, tpu.core_type = #tpu.core_type<tc>, window_params = [{transform_indices = @transform_0, window_bounds = array<i64: 16, 128>}, {transform_indices = @transform_1, window_bounds = array<i64: 16, 128>}, {transform_indices = @transform_2, window_bounds = array<i64: 16, 128>}, {transform_indices = @transform_3, window_bounds = array<i64: 1, 1>}]} {
    %c0_i32 = arith.constant 0 : i32
    %0 = arith.cmpi eq, %arg0, %c0_i32 : i32
    %1 = arith.extui %0 : i1 to i32
    %c0_i32_0 = arith.constant 0 : i32
    %2 = arith.cmpi ne, %1, %c0_i32_0 : i32
    scf.if %2 {
      %cst_17 = arith.constant 0.000000e+00 : f32
      %38 = vector.broadcast %cst_17 : f32 to vector<16x128xf32>
      %c0_18 = arith.constant 0 : index
      %c0_19 = arith.constant 0 : index
      %39 = vector.load %arg6[%c0_18, %c0_19] : memref<16x128xf32, #tpu.memory_space<vmem>>, vector<16x128xf32>
      tpu.vector_store %arg6[%c0_18, %c0_19], %38 {strides = array<i32>} : memref<16x128xf32, #tpu.memory_space<vmem>>, vector<16x128xf32>,
      %cst_20 = arith.constant 0.000000e+00 : f32
      %40 = vector.broadcast %cst_20 : f32 to vector<16x128xf32>
      %c0_21 = arith.constant 0 : index
      %c0_22 = arith.constant 0 : index
      %41 = vector.load %arg7[%c0_21, %c0_22] : memref<16x128xf32, #tpu.memory_space<vmem>>, vector<16x128xf32>
      tpu.vector_store %arg7[%c0_21, %c0_22], %40 {strides = array<i32>} : memref<16x128xf32, #tpu.memory_space<vmem>>, vector<16x128xf32>,
    } else {
    }
    %c0 = arith.constant 0 : index
    %3 = memref.load %arg1[%c0] : memref<2xi32, #tpu.memory_space<smem>>
    %c0_i32_1 = arith.constant 0 : i32
    %c16_i32 = arith.constant 16 : i32
    %4 = arith.muli %c0_i32_1, %c16_i32 : i32
    %5 = tpu.assume_multiple %4, 16 : i32
    %6 = arith.index_cast %5 : i32 to index
    %c0_2 = arith.constant 0 : index
    %7 = vector.load %arg2[%6, %c0_2] : memref<16x128xf32, #tpu.memory_space<vmem>>, vector<16x128xf32>
    %8 = arith.index_cast %5 : i32 to index
    %c0_3 = arith.constant 0 : index
    %9 = vector.load %arg3[%8, %c0_3] : memref<16x128xf32, #tpu.memory_space<vmem>>, vector<16x128xf32>
    %10 = arith.index_cast %5 : i32 to index
    %c0_4 = arith.constant 0 : index
    %11 = vector.load %arg4[%10, %c0_4] : memref<16x128xf32, #tpu.memory_space<vmem>>, vector<16x128xf32>
    %12 = arith.subf %7, %9 : vector<16x128xf32>
    %13 = arith.subf %11, %9 : vector<16x128xf32>
    %c16_i32_5 = arith.constant 16 : i32
    %14 = arith.muli %arg0, %c16_i32_5 : i32
    %15 = arith.addi %14, %5 : i32
    %16 = tpu.iota {dimensions = array<i32: 0>} : vector<16x1xi32>
    %17 = vector.broadcast %15 : i32 to vector<16x1xi32>
    %18 = arith.addi %17, %16 : vector<16x1xi32>
    %19 = vector.broadcast %3 : i32 to vector<16x1xi32>
    %20 = arith.cmpi slt, %18, %19 : vector<16x1xi32>
    %cst = arith.constant 0.000000e+00 : f32
    %21 = vector.shape_cast %20 : vector<16x1xi1> to vector<16x1xi1>
    %22 = vector.broadcast %21 : vector<16x1xi1> to vector<16x128xi1>
    %23 = vector.broadcast %cst : f32 to vector<16x128xf32>
    %24 = arith.select %22, %12, %23 : vector<16x128xi1>, vector<16x128xf32>
    %cst_6 = arith.constant 0.000000e+00 : f32
    %25 = vector.shape_cast %20 : vector<16x1xi1> to vector<16x1xi1>
    %26 = vector.broadcast %25 : vector<16x1xi1> to vector<16x128xi1>
    %27 = vector.broadcast %cst_6 : f32 to vector<16x128xf32>
    %28 = arith.select %26, %13, %27 : vector<16x128xi1>, vector<16x128xf32>
    %c0_7 = arith.constant 0 : index
    %c0_8 = arith.constant 0 : index
    %29 = vector.load %arg6[%c0_7, %c0_8] : memref<16x128xf32, #tpu.memory_space<vmem>>, vector<16x128xf32>
    %30 = arith.addf %29, %24 : vector<16x128xf32>
    %c0_9 = arith.constant 0 : index
    %c0_10 = arith.constant 0 : index
    %31 = vector.load %arg6[%c0_9, %c0_10] : memref<16x128xf32, #tpu.memory_space<vmem>>, vector<16x128xf32>
    tpu.vector_store %arg6[%c0_9, %c0_10], %30 {strides = array<i32>} : memref<16x128xf32, #tpu.memory_space<vmem>>, vector<16x128xf32>,
    %c0_11 = arith.constant 0 : index
    %c0_12 = arith.constant 0 : index
    %32 = vector.load %arg7[%c0_11, %c0_12] : memref<16x128xf32, #tpu.memory_space<vmem>>, vector<16x128xf32>
    %33 = arith.addf %32, %28 : vector<16x128xf32>
    %c0_13 = arith.constant 0 : index
    %c0_14 = arith.constant 0 : index
    %34 = vector.load %arg7[%c0_13, %c0_14] : memref<16x128xf32, #tpu.memory_space<vmem>>, vector<16x128xf32>
    tpu.vector_store %arg7[%c0_13, %c0_14], %33 {strides = array<i32>} : memref<16x128xf32, #tpu.memory_space<vmem>>, vector<16x128xf32>,
    %c1_i32 = arith.constant 1 : i32
    %c1_i32_15 = arith.constant 1 : i32
    %35 = arith.cmpi eq, %arg0, %c1_i32_15 : i32
    %36 = arith.extui %35 : i1 to i32
    %c0_i32_16 = arith.constant 0 : i32
    %37 = arith.cmpi ne, %36, %c0_i32_16 : i32
    scf.if %37 {
      %c1 = arith.constant 1 : index
      %38 = memref.load %arg1[%c1] : memref<2xi32, #tpu.memory_space<smem>>
      %39 = arith.sitofp %38 : i32 to f32
      %40 = arith.mulf %39, %39 : f32
      %cst_17 = arith.constant 1.000000e+00 : f32
      %41 = arith.divf %cst_17, %40 : f32
      %c0_18 = arith.constant 0 : index
      %c0_19 = arith.constant 0 : index
      %42 = vector.load %arg6[%c0_18, %c0_19] : memref<16x128xf32, #tpu.memory_space<vmem>>, vector<16x128xf32>
      %c0_20 = arith.constant 0 : index
      %c0_21 = arith.constant 0 : index
      %43 = vector.load %arg7[%c0_20, %c0_21] : memref<16x128xf32, #tpu.memory_space<vmem>>, vector<16x128xf32>
      %44 = vector.extract_strided_slice %42 {offsets = [0, 0], sizes = [16, 32], strides = [1, 1]} : vector<16x128xf32> to vector<16x32xf32>
      %45 = vector.extract_strided_slice %43 {offsets = [0, 0], sizes = [16, 32], strides = [1, 1]} : vector<16x128xf32> to vector<16x32xf32>
      %46 = vector.extract_strided_slice %42 {offsets = [0, 32], sizes = [16, 32], strides = [1, 1]} : vector<16x128xf32> to vector<16x32xf32>
      %47 = arith.addf %44, %46 : vector<16x32xf32>
      %48 = vector.extract_strided_slice %43 {offsets = [0, 32], sizes = [16, 32], strides = [1, 1]} : vector<16x128xf32> to vector<16x32xf32>
      %49 = arith.addf %45, %48 : vector<16x32xf32>
      %50 = vector.extract_strided_slice %42 {offsets = [0, 64], sizes = [16, 32], strides = [1, 1]} : vector<16x128xf32> to vector<16x32xf32>
      %51 = arith.addf %47, %50 : vector<16x32xf32>
      %52 = vector.extract_strided_slice %43 {offsets = [0, 64], sizes = [16, 32], strides = [1, 1]} : vector<16x128xf32> to vector<16x32xf32>
      %53 = arith.addf %49, %52 : vector<16x32xf32>
      %54 = vector.extract_strided_slice %42 {offsets = [0, 96], sizes = [16, 32], strides = [1, 1]} : vector<16x128xf32> to vector<16x32xf32>
      %55 = arith.addf %51, %54 : vector<16x32xf32>
      %56 = vector.extract_strided_slice %43 {offsets = [0, 96], sizes = [16, 32], strides = [1, 1]} : vector<16x128xf32> to vector<16x32xf32>
      %57 = arith.addf %53, %56 : vector<16x32xf32>
      %cst_22 = arith.constant dense<0.000000e+00> : vector<32xf32>
      %58 = vector.multi_reduction <add>, %55, %cst_22 [0] : vector<16x32xf32> to vector<32xf32>
      %59 = vector.shape_cast %58 : vector<32xf32> to vector<1x32xf32>
      %cst_23 = arith.constant dense<0.000000e+00> : vector<32xf32>
      %60 = vector.multi_reduction <add>, %57, %cst_23 [0] : vector<16x32xf32> to vector<32xf32>
      %61 = vector.shape_cast %60 : vector<32xf32> to vector<1x32xf32>
      %62 = arith.mulf %59, %59 : vector<1x32xf32>
      %63 = vector.shape_cast %62 : vector<1x32xf32> to vector<1x1x32xf32>
      %cst_24 = arith.constant dense<0.000000e+00> : vector<1xf32>
      %64 = vector.multi_reduction <add>, %63, %cst_24 [1, 2] : vector<1x1x32xf32> to vector<1xf32>
      %65 = vector.shape_cast %64 : vector<1xf32> to vector<1x1x1xf32>
      %66 = vector.extract %65[0, 0, 0] : f32 from vector<1x1x1xf32>
      %67 = arith.mulf %66, %41 : f32
      %68 = arith.mulf %61, %61 : vector<1x32xf32>
      %69 = vector.shape_cast %68 : vector<1x32xf32> to vector<1x1x32xf32>
      %cst_25 = arith.constant dense<0.000000e+00> : vector<1xf32>
      %70 = vector.multi_reduction <add>, %69, %cst_25 [1, 2] : vector<1x1x32xf32> to vector<1xf32>
      %71 = vector.shape_cast %70 : vector<1xf32> to vector<1x1x1xf32>
      %72 = vector.extract %71[0, 0, 0] : f32 from vector<1x1x1xf32>
      %73 = arith.mulf %72, %41 : f32
      %cst_26 = arith.constant 0.000000e+00 : f32
      %74 = arith.maximumf %67, %cst_26 : f32
      %cst_27 = arith.constant 0.000000e+00 : f32
      %75 = arith.maximumf %73, %cst_27 : f32
      %76 = arith.addf %74, %75 : f32
      %c0_28 = arith.constant 0 : index
      %c0_29 = arith.constant 0 : index
      %77 = memref.load %arg5[%c0_28, %c0_29] : memref<1x1xf32, #tpu.memory_space<smem>>
      memref.store %76, %arg5[%c0_28, %c0_29] : memref<1x1xf32, #tpu.memory_space<smem>>
    } else {
    }
    return
  }
  func.func @transform_0(%arg0: i32, %arg1: memref<2xi32, #tpu.memory_space<smem>>) -> (i32, i32) {
    %c0_i32 = arith.constant 0 : i32
    %c0_i32_0 = arith.constant 0 : i32
    return %arg0, %c0_i32 : i32, i32
  }
  func.func @transform_1(%arg0: i32, %arg1: memref<2xi32, #tpu.memory_space<smem>>) -> (i32, i32) {
    %c0_i32 = arith.constant 0 : i32
    %c0_i32_0 = arith.constant 0 : i32
    return %arg0, %c0_i32 : i32, i32
  }
  func.func @transform_2(%arg0: i32, %arg1: memref<2xi32, #tpu.memory_space<smem>>) -> (i32, i32) {
    %c0_i32 = arith.constant 0 : i32
    %c0_i32_0 = arith.constant 0 : i32
    return %arg0, %c0_i32 : i32, i32
  }
  func.func @transform_3(%arg0: i32, %arg1: memref<2xi32, #tpu.memory_space<smem>>) -> (i32, i32) {
    %c0_i32 = arith.constant 0 : i32
    %c0_i32_0 = arith.constant 0 : i32
    %c0_i32_1 = arith.constant 0 : i32
    return %c0_i32, %c0_i32_0 : i32, i32
  }
}

</mosaic_0001>

<llo_original>
// kernel: tpu_custom_call.1
$region0: #{tpu_custom_call.1}
  #allocation0 [shape = 'u32[]', space=smem, size = 0x4, offset = 0x4, fixed_abs, tag = 'smem constant byte address 0x4 - core index']
  #allocation1 [shape = 'u32[144,128]{1,0:T(1,128)}', space=vmem, size = 0x12000, scoped, tag = 'internal scratch']
  #allocation2 [shape = 'f32[16,128]{1,0:T(8,128)}', space=vmem, size = 0x2000, scoped, tag = 'scratch operand']
  #allocation3 [shape = 'f32[16,128]{1,0:T(8,128)}', space=vmem, size = 0x2000, scoped, tag = 'scratch operand']
  #allocation4 [shape = 's32[1]{0}', space=sflag, size = 0x4, scoped, tag = 'scoped memory for tpu_custom_call.1']
  #allocation5 [shape = 'u8[512]{0}', space=smem, size = 0x200, scoped, tag = 'prefetched SMEM operand 0']
  %s0 = inlined_call_operand.hbm [shape: s32[2], index: 0, kind: input, shape index: {}]
  %s1 = inlined_call_operand.hbm [shape: f32[24,128], index: 1, kind: input, shape index: {}]
  %s2 = inlined_call_operand.hbm [shape: f32[24,128], index: 2, kind: input, shape index: {}]
  %s3 = inlined_call_operand.hbm [shape: f32[24,128], index: 3, kind: input, shape index: {}]
  %s4 = inlined_call_operand.hbm [shape: f32[1,1], index: 4, kind: output, shape index: {}]
  %s5 = sld [smem:[#allocation0]]
  $region65: #{tpu_custom_call.1} parent=0
    _
  %s7 = ssub.s32 1, %s5
  %s8 = scalar_select 0, %s7, %s5
  %10 = dma.hbm_to_smem %s0, 16, [#allocation5], [#allocation4]
  %11 = dma.done [#allocation4], 16
  %12 = sfence
  $region1: #{tpu_custom_call.1} parent=0
    #allocation6 [shape = 'u8[16384]{0}', space=vmem, size = 0x4000, scoped, tag = 'input window, operand 1']
    #allocation7 [shape = 's32[2]{0}', space=sflag, size = 0x8, scoped, tag = 'scoped memory for tpu_custom_call.1']
    #allocation8 [shape = 's32[2]{0}', space=sflag, size = 0x8, scoped, tag = 'scoped memory for tpu_custom_call.1']
    #allocation9 [shape = 'u8[16384]{0}', space=vmem, size = 0x4000, scoped, tag = 'input window, operand 2']
    #allocation10 [shape = 's32[2]{0}', space=sflag, size = 0x8, scoped, tag = 'scoped memory for tpu_custom_call.1']
    #allocation11 [shape = 'u8[16384]{0}', space=vmem, size = 0x4000, scoped, tag = 'input window, operand 3']
    #allocation12 [shape = 'u8[512]{0}', space=smem, size = 0x200, scoped, tag = 'output window, operand 0, single buffered']
    %13 = vsyncpa [#allocation7], 0
    %s14 = scalar_lea.sflag [#allocation7], 1
    %15 = vsyncpa %s14, 0
    %16 = vsyncpa [#allocation10], 0
    %s17 = scalar_lea.sflag [#allocation10], 1
    %18 = vsyncpa %s17, 0
    %19 = vsyncpa [#allocation8], 0
    loop: start=0, step=1, limit=4
    $region2: #{tpu_custom_call.1} parent=1 // loop_pre_header
      _
    $region3: #{tpu_custom_call.1} parent=1 // loop_header
      %s21 = sphi 0, %s25
      %p22 = scmp.ge.s32.totalorder %s21, 4
      %s31 = sphi 0, %s33
      %s34 = sphi 0, %s31
      %s35 = sphi 0, %s34
      %s51 = sphi 0, %s35
      %s57 = sphi 0, %s59
      %s60 = sphi 0, %s57
      %s61 = sphi 0, %s60
      %s77 = sphi 0, %s61
      %s83 = sphi 0, %s85
      %s86 = sphi 0, %s83
      %s87 = sphi 0, %s86
      %s103 = sphi 0, %s87
      %s107 = sphi 0, %s107
      %s109 = sphi 0, %s107
      %s110 = sphi 0, %s109
      %s124 = sphi 0, %s110
    $region4: #{tpu_custom_call.1} parent=1 // loop_header_branch
      %24 = sbr.rel (%p22) target = $region8
    $region5: #{tpu_custom_call.1} parent=1 // loop_body
      %s26 = ssub.s32 %s21, 1
      %s27 = ssub.s32 %s21, 2
      %s28 = sadd.s32 %s21, 1
      %s29 = ssub.s32 %s21, %s28
      %p30 = scmp.eq.s32.totalorder %s29, 0
      %s32 = sadd.s32 %s31, 1
      %s33 = scalar_select %p30, %s31, %s32
      %p36 = pneg %p30
      %p37 = scmp.eq.s32.totalorder %s21, 1
      %p38 = por %p36, %p37
      %p39 = scmp.ne.s32.totalorder %s31, %s34
      %p40 = scmp.eq.s32.totalorder %s21, 0
      %p41 = por %p39, %p40
      %p42 = scmp.ne.s32.totalorder %s31, %s34
      %p43 = scmp.eq.s32.totalorder %s26, 1
      %p44 = por %p42, %p43
      %p45 = scmp.ne.s32.totalorder %s34, %s35
      %p46 = scmp.eq.s32.totalorder %s26, 0
      %p47 = por %p45, %p46
      %p48 = scmp.ne.s32.totalorder %s34, %s35
      %p49 = scmp.eq.s32.totalorder %s27, 1
      %p50 = por %p48, %p49
      %p52 = scmp.ne.s32.totalorder %s35, %s51
      %p53 = scmp.eq.s32.totalorder %s27, 0
      %p54 = por %p52, %p53
      %s55 = ssub.s32 %s21, %s28
      %p56 = scmp.eq.s32.totalorder %s55, 0
      %s58 = sadd.s32 %s57, 1
      %s59 = scalar_select %p56, %s57, %s58
      %p62 = pneg %p56
      %p63 = scmp.eq.s32.totalorder %s21, 1
      %p64 = por %p62, %p63
      %p65 = scmp.ne.s32.totalorder %s57, %s60
      %p66 = scmp.eq.s32.totalorder %s21, 0
      %p67 = por %p65, %p66
      %p68 = scmp.ne.s32.totalorder %s57, %s60
      %p69 = scmp.eq.s32.totalorder %s26, 1
      %p70 = por %p68, %p69
      %p71 = scmp.ne.s32.totalorder %s60, %s61
      %p72 = scmp.eq.s32.totalorder %s26, 0
      %p73 = por %p71, %p72
      %p74 = scmp.ne.s32.totalorder %s60, %s61
      %p75 = scmp.eq.s32.totalorder %s27, 1
      %p76 = por %p74, %p75
      %p78 = scmp.ne.s32.totalorder %s61, %s77
      %p79 = scmp.eq.s32.totalorder %s27, 0
      %p80 = por %p78, %p79
      %s81 = ssub.s32 %s21, %s28
      %p82 = scmp.eq.s32.totalorder %s81, 0
      %s84 = sadd.s32 %s83, 1
      %s85 = scalar_select %p82, %s83, %s84
      %p88 = pneg %p82
      %p89 = scmp.eq.s32.totalorder %s21, 1
      %p90 = por %p88, %p89
      %p91 = scmp.ne.s32.totalorder %s83, %s86
      %p92 = scmp.eq.s32.totalorder %s21, 0
      %p93 = por %p91, %p92
      %p94 = scmp.ne.s32.totalorder %s83, %s86
      %p95 = scmp.eq.s32.totalorder %s26, 1
      %p96 = por %p94, %p95
      %p97 = scmp.ne.s32.totalorder %s86, %s87
      %p98 = scmp.eq.s32.totalorder %s26, 0
      %p99 = por %p97, %p98
      %p100 = scmp.ne.s32.totalorder %s86, %s87
      %p101 = scmp.eq.s32.totalorder %s27, 1
      %p102 = por %p100, %p101
      %p104 = scmp.ne.s32.totalorder %s87, %s103
      %p105 = scmp.eq.s32.totalorder %s27, 0
      %p106 = por %p104, %p105
      %s108 = sadd.s32 %s107, 1
      %p111 = scmp.eq.s32.totalorder %s21, 1
      %p112 = scmp.ne.s32.totalorder %s107, %s109
      %p113 = scmp.eq.s32.totalorder %s21, 0
      %p114 = por %p112, %p113
      %p115 = scmp.ne.s32.totalorder %s107, %s109
      %p116 = scmp.eq.s32.totalorder %s26, 1
      %p117 = por %p115, %p116
      %p118 = scmp.ne.s32.totalorder %s109, %s110
      %p119 = scmp.eq.s32.totalorder %s26, 0
      %p120 = por %p118, %p119
      %p121 = scmp.ne.s32.totalorder %s109, %s110
      %p122 = scmp.eq.s32.totalorder %s27, 1
      %p123 = por %p121, %p122
      %p125 = scmp.ne.s32.totalorder %s110, %s124
      %p126 = scmp.eq.s32.totalorder %s27, 0
      %p127 = por %p125, %p126
      %p128 = scmp.le.s32.totalorder 1, %s21
      %p129 = scmp.lt.s32.totalorder %s21, 3
      %p130 = pnand %p128, %p129
      %p131 = pneg %p130
      // Predicated region
      $region9: #{tpu_custom_call.1} parent=5 // pred_check
        _
      $region10: #{tpu_custom_call.1} parent=5 // pred_check_branch
        %133 = sbr.rel (%p130) target = $region12
      $region11: #{tpu_custom_call.1} parent=5 // pred_region
        %s134 = ssub.s32 %s21, 1
      $region12: #{tpu_custom_call.1} parent=5 // pred_fallthru
        _
      %p135 = scmp.lt.s32.totalorder %s21, 2
      // Predicated region
      $region13: #{tpu_custom_call.1} parent=5 // pred_check
        %p136 = pneg %p135
      $region14: #{tpu_custom_call.1} parent=5 // pred_check_branch
        %138 = sbr.rel (%p136) target = $region16
      $region15: #{tpu_custom_call.1} parent=5 // pred_region
        // Predicated region
        $region17: #{tpu_custom_call.1} parent=15 // pred_check
          %p139 = pneg %p41
        $region18: #{tpu_custom_call.1} parent=15 // pred_check_branch
          %141 = sbr.rel (%p139) target = $region20
        $region19: #{tpu_custom_call.1} parent=15 // pred_region
          %s142 = sand.u32 %s31, 1
          %s143 = scalar_lea.sflag [#allocation7], %s142
          %s144 = sand.u32 %s31, 1
          %s145 = smul.addr %s144, 16
          %s146 = scalar_lea.vmem [#allocation6], %s145
          %s147 = smul.u32 2, %s21
          %s148 = ssub.s32 3, %s147
          %p149 = scmp.lt.s32.totalorder %s148, 2
          %s150 = scalar_select %p149, %s148, 2
          %s151 = smul.u32 128, %s150
          %s153 = ssub.s32 256, %s151
          %154 = vsyncadd %s143, %s153
          %p155 = scmp.ne.s32.totalorder 0, %s151
          %s156 = smul.addr %s147, 128
          %s157 = scalar_lea.hbm %s1, %s156
          %s158 = smul.u32 8, %s150
          %s159 = sshll.u32 %s146, 4
          %s160 = int_to_ptr.vmem [resolvable:$true] %s159
          %s161 = sshll.u32 %s158, 4
          %165 = dma.hbm_to_vmem [thread:$0]  (%p155), %s157, %s161, %s160, %s143, 128, 128, 8
        $region20: #{tpu_custom_call.1} parent=15 // pred_fallthru
          _
        // Predicated region
        $region21: #{tpu_custom_call.1} parent=15 // pred_check
          %p166 = pneg %p67
        $region22: #{tpu_custom_call.1} parent=15 // pred_check_branch
          %168 = sbr.rel (%p166) target = $region24
        $region23: #{tpu_custom_call.1} parent=15 // pred_region
          %s169 = sand.u32 %s21, 1
          %s170 = scalar_lea.sflag [#allocation10], %s169
          %s171 = sand.u32 %s57, 1
          %s172 = smul.addr %s171, 16
          %s173 = scalar_lea.vmem [#allocation9], %s172
          %s174 = smul.u32 2, %s21
          %s175 = ssub.s32 3, %s174
          %p176 = scmp.lt.s32.totalorder %s175, 2
          %s177 = scalar_select %p176, %s175, 2
          %s178 = smul.u32 128, %s177
          %s180 = ssub.s32 256, %s178
          %181 = vsyncadd %s170, %s180
          %p182 = scmp.ne.s32.totalorder 0, %s178
          %s183 = smul.addr %s174, 128
          %s184 = scalar_lea.hbm %s2, %s183
          %s185 = smul.u32 8, %s177
          %s186 = sshll.u32 %s173, 4
          %s187 = int_to_ptr.vmem [resolvable:$true] %s186
          %s188 = sshll.u32 %s185, 4
          %192 = dma.hbm_to_vmem [thread:$0]  (%p182), %s184, %s188, %s187, %s170, 128, 128, 8
        $region24: #{tpu_custom_call.1} parent=15 // pred_fallthru
          _
        // Predicated region
        $region25: #{tpu_custom_call.1} parent=15 // pred_check
          %p193 = pneg %p93
        $region26: #{tpu_custom_call.1} parent=15 // pred_check_branch
          %195 = sbr.rel (%p193) target = $region28
        $region27: #{tpu_custom_call.1} parent=15 // pred_region
          %s196 = sand.u32 %s21, 1
          %s197 = scalar_lea.sflag [#allocation10], %s196
          %s198 = sand.u32 %s83, 1
          %s199 = smul.addr %s198, 16
          %s200 = scalar_lea.vmem [#allocation11], %s199
          %s201 = smul.u32 2, %s21
          %s202 = ssub.s32 3, %s201
          %p203 = scmp.lt.s32.totalorder %s202, 2
          %s204 = scalar_select %p203, %s202, 2
          %s205 = smul.u32 128, %s204
          %s207 = ssub.s32 256, %s205
          %208 = vsyncadd %s197, %s207
          %p209 = scmp.ne.s32.totalorder 0, %s205
          %s210 = smul.addr %s201, 128
          %s211 = scalar_lea.hbm %s3, %s210
          %s212 = smul.u32 8, %s204
          %s213 = sshll.u32 %s200, 4
          %s214 = int_to_ptr.vmem [resolvable:$true] %s213
          %s215 = sshll.u32 %s212, 4
          %219 = dma.hbm_to_vmem [thread:$0]  (%p209), %s211, %s215, %s214, %s197, 128, 128, 8
        $region28: #{tpu_custom_call.1} parent=15 // pred_fallthru
          _
      $region16: #{tpu_custom_call.1} parent=5 // pred_fallthru
        _
      %p220 = scmp.le.s32.totalorder 1, %s21
      %p221 = scmp.lt.s32.totalorder %s21, 3
      %p222 = pnand %p220, %p221
      %p223 = pneg %p222
      // Predicated region
      $region29: #{tpu_custom_call.1} parent=5 // pred_check
        _
      $region30: #{tpu_custom_call.1} parent=5 // pred_check_branch
        %225 = sbr.rel (%p222) target = $region32
      $region31: #{tpu_custom_call.1} parent=5 // pred_region
        %s226 = ssub.s32 %s21, 1
        %s227 = sand.u32 %s34, 1
        %s228 = scalar_lea.sflag [#allocation7], %s227
        %s229 = sand.u32 %s34, 1
        %s230 = smul.addr %s229, 16
        %s231 = scalar_lea.vmem [#allocation6], %s230
        // Predicated region
        $region33: #{tpu_custom_call.1} parent=31 // pred_check
          %p232 = pneg %p47
        $region34: #{tpu_custom_call.1} parent=31 // pred_check_branch
          %234 = sbr.rel (%p232) target = $region36
        $region35: #{tpu_custom_call.1} parent=31 // pred_region
          %235 = dma.done %s228, 256
        $region36: #{tpu_custom_call.1} parent=31 // pred_fallthru
          _
        %s236 = sand.u32 %s26, 1
        %s237 = scalar_lea.sflag [#allocation10], %s236
        %s238 = sand.u32 %s60, 1
        %s239 = smul.addr %s238, 16
        %s240 = scalar_lea.vmem [#allocation9], %s239
        // Predicated region
        $region37: #{tpu_custom_call.1} parent=31 // pred_check
          %p241 = pneg %p73
        $region38: #{tpu_custom_call.1} parent=31 // pred_check_branch
          %243 = sbr.rel (%p241) target = $region40
        $region39: #{tpu_custom_call.1} parent=31 // pred_region
          %244 = dma.done %s237, 256
        $region40: #{tpu_custom_call.1} parent=31 // pred_fallthru
          _
        %s245 = sand.u32 %s26, 1
        %s246 = scalar_lea.sflag [#allocation10], %s245
        %s247 = sand.u32 %s86, 1
        %s248 = smul.addr %s247, 16
        %s249 = scalar_lea.vmem [#allocation11], %s248
        // Predicated region
        $region41: #{tpu_custom_call.1} parent=31 // pred_check
          %p250 = pneg %p99
        $region42: #{tpu_custom_call.1} parent=31 // pred_check_branch
          %252 = sbr.rel (%p250) target = $region44
        $region43: #{tpu_custom_call.1} parent=31 // pred_region
          %253 = dma.done %s246, 256
        $region44: #{tpu_custom_call.1} parent=31 // pred_fallthru
          _
        %s254 = sand.u32 %s34, 1
        %s255 = scalar_lea.sflag [#allocation7], %s254
        %s256 = sand.u32 %s34, 1
        %s257 = smul.addr %s256, 16
        %s258 = scalar_lea.vmem [#allocation6], %s257
        %p259 = pneg %p47
        %p260 = pneg %p44
        %s261 = sand.u32 %s26, 1
        %s262 = scalar_lea.sflag [#allocation10], %s261
        %s263 = sand.u32 %s60, 1
        %s264 = smul.addr %s263, 16
        %s265 = scalar_lea.vmem [#allocation9], %s264
        %p266 = pneg %p73
        %p267 = pneg %p70
        %s268 = sand.u32 %s26, 1
        %s269 = scalar_lea.sflag [#allocation10], %s268
        %s270 = sand.u32 %s86, 1
        %s271 = smul.addr %s270, 16
        %s272 = scalar_lea.vmem [#allocation11], %s271
        %p273 = pneg %p99
        %p274 = pneg %p96
        %p275 = pneg %p120
        %p276 = pneg %p117
        %s277 = smul.u32 2, %s26
        %s278 = ssub.s32 3, %s277
        %p279 = scmp.lt.s32.totalorder %s278, 2
        %s280 = scalar_select %p279, %s278, 2
        %s281 = smul.u32 128, %s280
        %s282 = smul.u32 2, %s26
        %s283 = ssub.s32 3, %s282
        %p284 = scmp.lt.s32.totalorder %s283, 2
        %s285 = scalar_select %p284, %s283, 2
        %s286 = smul.u32 128, %s285
        %s287 = smul.u32 2, %s26
        %s288 = ssub.s32 3, %s287
        %p289 = scmp.lt.s32.totalorder %s288, 2
        %s290 = scalar_select %p289, %s288, 2
        %s291 = smul.u32 128, %s290
        %p292 = scmp.eq.s32.totalorder %s26, 0
        // Predicated region
        $region45: #{tpu_custom_call.1} parent=31 // pred_check
          %p293 = pneg %p292
        $region46: #{tpu_custom_call.1} parent=31 // pred_check_branch
          %295 = sbr.rel (%p293) target = $region48
        $region47: #{tpu_custom_call.1} parent=31 // pred_region
          %296 = vst [vmem:[#allocation2] sm:$0xff] 0.0
          %297 = vst [vmem:[#allocation2 + $0x8] sm:$0xff] 0.0
          %298 = vst [vmem:[#allocation3] sm:$0xff] 0.0
          %299 = vst [vmem:[#allocation3 + $0x8] sm:$0xff] 0.0
        $region48: #{tpu_custom_call.1} parent=31 // pred_fallthru
          _
        %s300 = sld [smem:[#allocation5]]
        %v301 = vld [vmem:[%s231] sm:$0xff]
        %v302 = vld [vmem:[%s231 + $0x8] sm:$0xff]
        %v303 = vld [vmem:[%s240] sm:$0xff]
        %v304 = vld [vmem:[%s240 + $0x8] sm:$0xff]
        %v305 = vld [vmem:[%s249] sm:$0xff]
        %v306 = vld [vmem:[%s249 + $0x8] sm:$0xff]
        %v307 = vsub.f32 %v301, %v303
        %v308 = vsub.f32 %v302, %v304
        %v309 = vsub.f32 %v305, %v303
        %v310 = vsub.f32 %v306, %v304
        %s311 = smul.u32 %s26, 16
        %s312 = sadd.s32 %s311, 0
        %v313 = vlaneseq
        %v314 = vshrl.u32 %v313, 7
        %v315 = vadd.s32 %v314, 8
        %v316 = vstv %s312
        %v317 = vadd.s32 %v316, %v314
        %v318 = vadd.s32 %v316, %v315
        %v319 = vstv %s300
        %vm320 = vcmp.lt.s32.totalorder %v317, %v319
        %vm321 = vcmp.lt.s32.totalorder %v318, %v319
        %v322 = vsel %vm320, 1, 0
        %v323 = vsel %vm321, 1, 0
        %vm324 = vcmp.eq.s32.totalorder %v322, 1
        %vm325 = vcmp.eq.s32.totalorder %v323, 1
        %v326 = vsel %vm324, %v307, 0.0
        %v327 = vsel %vm325, %v308, 0.0
        %v328 = vsel %vm324, %v309, 0.0
        %v329 = vsel %vm325, %v310, 0.0
        %v330 = vld [vmem:[#allocation2] sm:$0xff]
        %v331 = vld [vmem:[#allocation2 + $0x8] sm:$0xff]
        %v332 = vadd.f32 %v330, %v326
        %v333 = vadd.f32 %v331, %v327
        %334 = vst [vmem:[#allocation2] sm:$0xff] %v332
        %335 = vst [vmem:[#allocation2 + $0x8] sm:$0xff] %v333
        %v336 = vld [vmem:[#allocation3] sm:$0xff]
        %v337 = vld [vmem:[#allocation3 + $0x8] sm:$0xff]
        %v338 = vadd.f32 %v336, %v328
        %v339 = vadd.f32 %v337, %v329
        %340 = vst [vmem:[#allocation3] sm:$0xff] %v338
        %341 = vst [vmem:[#allocation3 + $0x8] sm:$0xff] %v339
        %p342 = scmp.eq.s32.totalorder %s26, 1
        // Predicated region
        $region49: #{tpu_custom_call.1} parent=31 // pred_check
          %p343 = pneg %p342
        $region50: #{tpu_custom_call.1} parent=31 // pred_check_branch
          %345 = sbr.rel (%p343) target = $region52
        $region51: #{tpu_custom_call.1} parent=31 // pred_region
          %s346 = sld [smem:[#allocation5 + $0x1]]
          %s347 = scvt.s32.f32 %s346
          %s348 = smul.f32 %s347, %s347
          %v349 = vstv %s348
          %v350 = vrcp.pop %v349
          %s351 = vtos %v350
          %v352 = vld [vmem:[#allocation2] sm:$0xff]
          %v353 = vld [vmem:[#allocation2 + $0x8] sm:$0xff]
          %v354 = vld [vmem:[#allocation3] sm:$0xff]
          %v355 = vld [vmem:[#allocation3 + $0x8] sm:$0xff]
          %358 = vrot.lane.b32.xlu0 %v352, 96
          %v359 = vpop.permute.xlu0 %358
          %360 = vrot.lane.b32.xlu0 %v353, 96
          %v361 = vpop.permute.xlu0 %360
          %v364 = vadd.f32 %v352, %v359
          %v365 = vadd.f32 %v353, %v361
          %368 = vrot.lane.b32.xlu0 %v354, 96
          %v369 = vpop.permute.xlu0 %368
          %370 = vrot.lane.b32.xlu0 %v355, 96
          %v371 = vpop.permute.xlu0 %370
          %v374 = vadd.f32 %v354, %v369
          %v375 = vadd.f32 %v355, %v371
          %376 = vrot.lane.b32.xlu0 %v352, 64
          %v377 = vpop.permute.xlu0 %376
          %378 = vrot.lane.b32.xlu0 %v353, 64
          %v379 = vpop.permute.xlu0 %378
          %v382 = vadd.f32 %v364, %v377
          %v383 = vadd.f32 %v365, %v379
          %384 = vrot.lane.b32.xlu0 %v354, 64
          %v385 = vpop.permute.xlu0 %384
          %386 = vrot.lane.b32.xlu0 %v355, 64
          %v387 = vpop.permute.xlu0 %386
          %v390 = vadd.f32 %v374, %v385
          %v391 = vadd.f32 %v375, %v387
          %392 = vrot.lane.b32.xlu0 %v352, 32
          %v393 = vpop.permute.xlu0 %392
          %394 = vrot.lane.b32.xlu0 %v353, 32
          %v395 = vpop.permute.xlu0 %394
          %v398 = vadd.f32 %v382, %v393
          %v399 = vadd.f32 %v383, %v395
          %400 = vrot.lane.b32.xlu0 %v354, 32
          %v401 = vpop.permute.xlu0 %400
          %402 = vrot.lane.b32.xlu0 %v355, 32
          %v403 = vpop.permute.xlu0 %402
          %v406 = vadd.f32 %v390, %v401
          %v407 = vadd.f32 %v391, %v403
          %vm408 = vcmask 261120
          %v409 = vsel %vm408, %v398, 0.0
          %v410 = vsel %vm408, %v399, 0.0
          %v411 = vadd.f32 %v409, %v410
          %v412 = vrot.slane %v411, 4
          %v413 = vadd.f32 %v411, %v412
          %v414 = vrot.slane %v413, 2
          %v415 = vadd.f32 %v413, %v414
          %v416 = vrot.slane %v415, 1
          %v417 = vadd.f32 %v415, %v416
          %v418 = vsel %vm408, %v406, 0.0
          %v419 = vsel %vm408, %v407, 0.0
          %v420 = vadd.f32 %v418, %v419
          %v421 = vrot.slane %v420, 4
          %v422 = vadd.f32 %v420, %v421
          %v423 = vrot.slane %v422, 2
          %v424 = vadd.f32 %v422, %v423
          %v425 = vrot.slane %v424, 1
          %v426 = vadd.f32 %v424, %v425
          %v427 = vmul.f32 %v417, %v417
          %vm428 = vcmask 253952
          %v429 = vsel %vm428, %v427, 0.0
          %430 = vadd.xlane.f32.xlu0 %v429
          %v431 = vpop.xlane.xlu0 %430
          %v432 = vrot.slane %v431, 4
          %v433 = vadd.f32 %v431, %v432
          %v434 = vrot.slane %v433, 2
          %v435 = vadd.f32 %v433, %v434
          %v436 = vrot.slane %v435, 1
          %v437 = vadd.f32 %v435, %v436
          %s438 = vtos %v437
          %s439 = smul.f32 %s438, %s351
          %v440 = vmul.f32 %v426, %v426
          %v441 = vsel %vm428, %v440, 0.0
          %442 = vadd.xlane.f32.xlu0 %v441
          %v443 = vpop.xlane.xlu0 %442
          %v444 = vrot.slane %v443, 4
          %v445 = vadd.f32 %v443, %v444
          %v446 = vrot.slane %v445, 2
          %v447 = vadd.f32 %v445, %v446
          %v448 = vrot.slane %v447, 1
          %v449 = vadd.f32 %v447, %v448
          %s450 = vtos %v449
          %s451 = smul.f32 %s450, %s351
          %s452 = smax.f32 %s439, 0.0
          %s453 = smax.f32 %s451, 0.0
          %s454 = sadd.f32 %s452, %s453
          %s455 = scalar_lea.smem [#allocation12], 0
          %456 = sst [smem:[%s455]] %s454
        $region52: #{tpu_custom_call.1} parent=31 // pred_fallthru
          _
        // Predicated region
        $region53: #{tpu_custom_call.1} parent=31 // pred_check
          %p457 = pneg %p117
        $region54: #{tpu_custom_call.1} parent=31 // pred_check_branch
          %459 = sbr.rel (%p457) target = $region56
        $region55: #{tpu_custom_call.1} parent=31 // pred_region
          %s461 = ssub.s32 16, 16
          %462 = vsyncadd [#allocation8], %s461
          %465 = dma.smem_to_hbm [#allocation12], 16, %s4, [#allocation8]
        $region56: #{tpu_custom_call.1} parent=31 // pred_fallthru
          _
        // Predicated region
        $region57: #{tpu_custom_call.1} parent=31 // pred_check
          %p466 = pneg %p117
        $region58: #{tpu_custom_call.1} parent=31 // pred_check_branch
          %468 = sbr.rel (%p466) target = $region60
        $region59: #{tpu_custom_call.1} parent=31 // pred_region
          %469 = dma.done [#allocation8], 16
        $region60: #{tpu_custom_call.1} parent=31 // pred_fallthru
          _
        %470 = sfence
      $region32: #{tpu_custom_call.1} parent=5 // pred_fallthru
        _
      %p471 = scmp.le.s32.totalorder 2, %s21
      // Predicated region
      $region61: #{tpu_custom_call.1} parent=5 // pred_check
        %p472 = pneg %p471
      $region62: #{tpu_custom_call.1} parent=5 // pred_check_branch
        %474 = sbr.rel (%p472) target = $region64
      $region63: #{tpu_custom_call.1} parent=5 // pred_region
        %s475 = ssub.s32 %s21, 2
      $region64: #{tpu_custom_call.1} parent=5 // pred_fallthru
        _
    $region6: #{tpu_custom_call.1} parent=1 // loop_footer
      %s25 = sadd.s32 1, %s21
    $region7: #{tpu_custom_call.1} parent=1 // loop_footer_branch
      %20 = sbr.rel target = $region3
    $region8: #{tpu_custom_call.1} parent=1 // loop_exit
      _
    %476 = vsyncpa [#allocation7], 1
    %s477 = scalar_lea.sflag [#allocation7], 1
    %478 = vsyncpa %s477, 1
    %479 = vsyncpa [#allocation10], 1
    %s480 = scalar_lea.sflag [#allocation10], 1
    %481 = vsyncpa %s480, 1
    %482 = vsyncpa [#allocation8], 1
    %s483 = scalar_lea.sflag [#allocation8], 1
    %484 = vsyncpa %s483, 1

</llo_original>
